<compile_context>
chip_gen: v5e
topology: v5e:2x2
jax: 0.10.0
libtpu: 0.0.40
codegen_flags: <defaults>
</compile_context>

<pallas_src>
from functools import partial

import numpy as np
import jax
import jax.numpy as jnp
from jax.experimental import pallas as pl
from jax.experimental.pallas import tpu as pltpu

F_PAD = 128      # padded feature width (lane dim)
LANE = 128
SUBLANE = 8


# ----------------------------- Pallas kernel --------------------------------

def gcn_fused_kernel(x0_ref, adj_ref, w_ref, b_ref, sel_ref, out_ref):
    """Whole GCN forward (all layers + batched readout) in one grid step.

    x0  : (NP, F_PAD)        bf16  initial node features (zero padded)
    adj : (NP, NP)           bf16  D^-1/2 (A+I) D^-1/2 (padded rows/cols = 0)
    w   : (L, F_PAD, F_PAD)  bf16  stacked zero-padded layer weights
    b   : (L, 1, F_PAD)      f32   stacked zero-padded layer biases
    sel : (BM, NP)           bf16  split/zeropad/subtract-first-node selection
    out : (BM, F_PAD)        f32   column 0 holds the flat (B*max_len,) output
    """
    x = x0_ref[...]                                   # (NP, F_PAD) bf16
    adj = adj_ref[...]                                # (NP, NP)    bf16
    n_layers = w_ref.shape[0]

    # n_convs is small and static -> fully unrolled at trace time; the whole
    # weight stack stays VMEM resident (constant block, no per-layer DMA).
    for l in range(n_layers):
        h = jnp.dot(x, w_ref[l], preferred_element_type=jnp.float32)      # X @ W_l      (MXU)
        y = jnp.dot(adj, h.astype(adj.dtype),
                    preferred_element_type=jnp.float32) + b_ref[l]        # A_hat @ (XW) + b (MXU)
        # reference's `x.relu()` is out-of-place and its result is discarded -> no activation
        x = y.astype(x.dtype)

    # Fused epilogue: torch.split + zeropad(max_len) + vstack + subtract-first-node,
    # encoded as one selection matmul (rows are +1 at the gathered node, -1 at the
    # graph's first node).  Only column 0 is meaningful (conv_out_dim == 1), but
    # the full 128-lane width keeps the store lane-dense (unmasked vst).
    out_ref[...] = jnp.dot(sel_ref[...], x, preferred_element_type=jnp.float32)


def fused_gcn(x0, adj, w_stack, b_stack, sel):
    n_pad = x0.shape[0]
    n_layers = w_stack.shape[0]
    bm_pad = sel.shape[0]
    return pl.pallas_call(
        gcn_fused_kernel,
        out_shape=jax.ShapeDtypeStruct((bm_pad, F_PAD), jnp.float32),
        grid=(1,),
        in_specs=[
            pl.BlockSpec((n_pad, F_PAD), lambda i: (0, 0)),               # x0
            pl.BlockSpec((n_pad, n_pad), lambda i: (0, 0)),               # adj (constant)
            pl.BlockSpec((n_layers, F_PAD, F_PAD), lambda i: (0, 0, 0)),  # all W_l
            pl.BlockSpec((n_layers, 1, F_PAD), lambda i: (0, 0, 0)),      # all b_l
            pl.BlockSpec((bm_pad, n_pad), lambda i: (0, 0)),              # selection matrix
        ],
        out_specs=pl.BlockSpec((bm_pad, F_PAD), lambda i: (0, 0)),
        compiler_params=pltpu.CompilerParams(
            dimension_semantics=("arbitrary",),
            vmem_limit_bytes=32 * 1024 * 1024,
        ),
    )(x0, adj, w_stack, b_stack, sel)


# ----------------------------- glue (host / JAX) -----------------------------

def init_gcn_params(key, layer_dims):
    """Deterministic synthetic GCNConv parameters: (W (din,dout), bias (dout,))."""
    params = []
    for (din, dout) in layer_dims:
        key, k1, k2 = jax.random.split(key, 3)
        w = jax.random.normal(k1, (din, dout), jnp.float32) / np.sqrt(max(din, 1))
        bias = 0.01 * jax.random.normal(k2, (dout,), jnp.float32)
        params.append((np.asarray(w), np.asarray(bias)))
    return params


def stack_padded_params(params):
    """Pad every layer to (F_PAD, F_PAD) / (1, F_PAD) and stack on a layer axis."""
    n_layers = len(params)
    w_stack = np.zeros((n_layers, F_PAD, F_PAD), np.float32)
    b_stack = np.zeros((n_layers, 1, F_PAD), np.float32)
    for l, (w, b) in enumerate(params):
        din, dout = w.shape
        w_stack[l, :din, :dout] = w
        b_stack[l, 0, :dout] = b
    return w_stack, b_stack


def build_normalized_adj(edge_index, edge_weight, num_nodes, n_pad):
    """Dense \\hat A = D^{-1/2} (A + I) D^{-1/2} as in PyG gcn_norm (fill=1).

    adj[i, j] = weight of edge j -> i (aggregated at target i); duplicate
    (dst, src) pairs are summed (np.add.at) as in PyG message passing.
    Padded rows/cols stay zero so padded nodes never leak into real nodes.
    """
    adj = np.zeros((n_pad, n_pad), np.float32)
    src = np.asarray(edge_index[0])
    dst = np.asarray(edge_index[1])
    np.add.at(adj, (dst, src), np.asarray(edge_weight, np.float32))
    idx = np.arange(num_nodes)
    # add_remaining_self_loops with fill_value=1.0 (only where missing)
    adj[idx, idx] = np.where(adj[idx, idx] == 0.0, 1.0, adj[idx, idx])
    deg = adj[:num_nodes, :num_nodes].sum(axis=1)                 # weighted in-degree
    dinv = np.where(deg > 0.0, 1.0 / np.sqrt(np.maximum(deg, 1e-30)), 0.0)
    adj[:num_nodes, :num_nodes] = (
        dinv[:, None] * adj[:num_nodes, :num_nodes] * dinv[None, :]
    )
    return adj


def build_selection_matrix(counts, max_len, n_pad):
    """Encodes split + zeropad(max_len) + stack + subtract-first-node as a matmul.

    Row r = b*max_len + p:  +1 at node offs[b]+p (if p < counts[b]), -1 at offs[b].
    Padded positions therefore evaluate to 0 - first_node (matches the reference,
    which zero-pads first and subtracts afterwards).
    """
    batch_size = len(counts)
    bm_pad = max(int(pl.cdiv(batch_size * max_len, SUBLANE) * SUBLANE), SUBLANE)
    sel = np.zeros((bm_pad, n_pad), np.float32)
    offs = np.cumsum([0] + list(counts))
    for b in range(batch_size):
        for p in range(max_len):
            r = b * max_len + p
            if p < counts[b]:
                sel[r, offs[b] + p] += 1.0
            sel[r, offs[b]] -= 1.0
    return sel


@partial(jax.jit, static_argnums=(5, 6))
def _device_forward(x0, adj, w_stack, b_stack, sel, batch_size, max_len):
    out_full = fused_gcn(x0, adj, w_stack, b_stack, sel)          # (BM_pad, F_PAD)
    # column 0 of the lane-dense kernel output holds the flat (B*max_len,) result
    return out_full[: batch_size * max_len, 0].reshape(batch_size, max_len)


def gcn_forward(c_list, edge_index, edge_attr, params, max_len):
    counts = [len(ci) for ci in c_list]            # == delays[i].size in the reference
    batch_size = len(counts)
    num_nodes = int(sum(counts))
    n_pad = max(int(pl.cdiv(num_nodes, LANE) * LANE), LANE)       # lane-align node axis

    # x = flat_c.view(-1, 1), zero-padded to (n_pad, F_PAD)
    flat_c = np.concatenate([np.asarray(ci, np.float32) for ci in c_list])
    x0 = np.zeros((n_pad, F_PAD), np.float32)
    x0[:num_nodes, 0] = flat_c

    adj_norm = build_normalized_adj(edge_index, edge_attr, num_nodes, n_pad)
    w_stack, b_stack = stack_padded_params(params)
    sel = build_selection_matrix(counts, max_len, n_pad)

    out = _device_forward(
        jnp.asarray(x0, jnp.bfloat16),
        jnp.asarray(adj_norm, jnp.bfloat16),
        jnp.asarray(w_stack, jnp.bfloat16),
        jnp.asarray(b_stack, jnp.float32),
        jnp.asarray(sel, jnp.bfloat16),
        batch_size, max_len)
    return out                                                    # (B, max_len)


def numpy_reference(c_list, edge_index, edge_attr, params, max_len):
    """Float32 reference of the torch forward (for a loose bf16 tolerance check)."""
    counts = [len(ci) for ci in c_list]
    num_nodes = int(sum(counts))
    adjn = build_normalized_adj(edge_index, edge_attr, num_nodes, num_nodes)
    x = np.concatenate([np.asarray(ci, np.float32) for ci in c_list]).reshape(-1, 1)
    for (w, b) in params:
        x = adjn @ (x @ w) + b[None, :]            # relu() result discarded in reference
    offs = np.cumsum([0] + counts)
    out = np.zeros((len(counts), max_len), np.float32)
    for bi in range(len(counts)):
        seg = np.zeros((max_len,), np.float32)
        seg[:counts[bi]] = x[offs[bi]:offs[bi + 1], 0]
        out[bi] = seg - x[offs[bi], 0]
    return out


if __name__ == "__main__":
    # args: conv_in_dim=1, conv_hi_dim=32, conv_out_dim=1, n_convs=3, max_len=8
    conv_in_dim, conv_hi_dim, conv_out_dim = 1, 32, 1
    n_convs, max_len = 3, 8

    key = jax.random.PRNGKey(0)
    layer_dims = [(conv_in_dim, conv_hi_dim)] + \
                 [(conv_hi_dim, conv_hi_dim)] * (n_convs - 2) + \
                 [(conv_hi_dim, conv_out_dim)]
    key, pkey = jax.random.split(key)
    params = init_gcn_params(pkey, layer_dims)

    # Synthetic batched graph data: 2 graphs with 5 and 7 nodes (PyG-style
    # batching: node ids offset per graph).
    node_counts = [5, 7]
    key, ck0, ck1, ek = jax.random.split(key, 4)
    c = [np.asarray(jax.random.normal(ck0, (node_counts[0],), jnp.float32)),
         np.asarray(jax.random.normal(ck1, (node_counts[1],), jnp.float32))]

    # bidirectional chain edges inside each graph
    edges = []
    offset = 0
    for n in node_counts:
        for u in range(n - 1):
            edges.append((offset + u, offset + u + 1))
            edges.append((offset + u + 1, offset + u))
        offset += n
    edge_index = np.asarray(edges, dtype=np.int32).T              # (2, E)
    edge_attr = np.asarray(jax.random.uniform(ek, (edge_index.shape[1],), jnp.float32))

    out = gcn_forward(c, edge_index, edge_attr, params, max_len)
    out = jax.block_until_ready(out)

    assert out.shape == (len(node_counts), max_len), out.shape
    assert bool(jnp.all(jnp.isfinite(out)))

    # loose check vs float32 reference (kernel runs bf16 operands / f32 accumulation)
    ref = numpy_reference(c, edge_index, edge_attr, params, max_len)
    scale = max(1.0, float(np.max(np.abs(ref))))
    max_err = float(np.max(np.abs(np.asarray(out, np.float32) - ref)))
    assert max_err < 0.08 * scale, f"mismatch vs reference: {max_err} (scale {scale})"

    # TODO(synk): self.mlps / self.readout are constructed in __init__ but never
    # used in forward(); intentionally omitted.
    print("KERNEL_OK")
</pallas_src>

<mosaic_0001>
module attributes {stable_mosaic.version = 11 : i64} {
  func.func @gcn_fused_kernel(%arg0: i32, %arg1: memref<128x128xbf16, #tpu.memory_space<vmem>>, %arg2: memref<128x128xbf16, #tpu.memory_space<vmem>>, %arg3: memref<3x128x128xbf16, #tpu.memory_space<vmem>>, %arg4: memref<3x1x128xf32, #tpu.memory_space<vmem>>, %arg5: memref<16x128xbf16, #tpu.memory_space<vmem>>, %arg6: memref<16x128xf32, #tpu.memory_space<vmem>>) attributes {dimension_semantics = [#tpu.dimension_semantics<arbitrary>], iteration_bounds = array<i64: 1>, scalar_prefetch = 0 : i64, scratch_operands = 0 : i64, tpu.core_type = #tpu.core_type<tc>, window_params = [{pipeline_mode = #tpu.pipeline_mode<synchronous>, transform_indices = @transform_0, window_bounds = array<i64: 128, 128>}, {pipeline_mode = #tpu.pipeline_mode<synchronous>, transform_indices = @transform_1, window_bounds = array<i64: 128, 128>}, {pipeline_mode = #tpu.pipeline_mode<synchronous>, transform_indices = @transform_2, window_bounds = array<i64: 3, 128, 128>}, {pipeline_mode = #tpu.pipeline_mode<synchronous>, transform_indices = @transform_3, window_bounds = array<i64: 3, 1, 128>}, {pipeline_mode = #tpu.pipeline_mode<synchronous>, transform_indices = @transform_4, window_bounds = array<i64: 16, 128>}, {pipeline_mode = #tpu.pipeline_mode<synchronous>, transform_indices = @transform_5, window_bounds = array<i64: 16, 128>}]} {
    %c0 = arith.constant 0 : index
    %c0_0 = arith.constant 0 : index
    %0 = vector.load %arg1[%c0, %c0_0] : memref<128x128xbf16, #tpu.memory_space<vmem>>, vector<128x128xbf16>
    %c0_1 = arith.constant 0 : index
    %c0_2 = arith.constant 0 : index
    %1 = vector.load %arg2[%c0_1, %c0_2] : memref<128x128xbf16, #tpu.memory_space<vmem>>, vector<128x128xbf16>
    %c0_3 = arith.constant 0 : index
    %c0_4 = arith.constant 0 : index
    %c0_5 = arith.constant 0 : index
    %2 = vector.load %arg3[%c0_3, %c0_4, %c0_5] : memref<3x128x128xbf16, #tpu.memory_space<vmem>>, vector<1x128x128xbf16>
    %3 = vector.shape_cast %2 : vector<1x128x128xbf16> to vector<128x128xbf16>
    %cst = arith.constant dense<0.000000e+00> : vector<128x128xf32>
    %4 = tpu.matmul %0, %3, %cst {dimension_numbers = #tpu.dot_dimension_numbers<[1], [0], [0], [1], [0, 0, 1, 1], [], []>} : vector<128x128xbf16>, vector<128x128xbf16>, vector<128x128xf32> -> vector<128x128xf32>
    %5 = arith.truncf %4 : vector<128x128xf32> to vector<128x128xbf16>
    %cst_6 = arith.constant dense<0.000000e+00> : vector<128x128xf32>
    %6 = tpu.matmul %1, %5, %cst_6 {dimension_numbers = #tpu.dot_dimension_numbers<[1], [0], [0], [1], [0, 0, 1, 1], [], []>} : vector<128x128xbf16>, vector<128x128xbf16>, vector<128x128xf32> -> vector<128x128xf32>
    %c0_7 = arith.constant 0 : index
    %c0_8 = arith.constant 0 : index
    %c0_9 = arith.constant 0 : index
    %7 = vector.load %arg4[%c0_7, %c0_8, %c0_9] : memref<3x1x128xf32, #tpu.memory_space<vmem>>, vector<1x1x128xf32>
    %8 = vector.shape_cast %7 : vector<1x1x128xf32> to vector<1x128xf32>
    %9 = vector.broadcast %8 : vector<1x128xf32> to vector<128x128xf32>
    %10 = arith.addf %6, %9 : vector<128x128xf32>
    %11 = arith.truncf %10 : vector<128x128xf32> to vector<128x128xbf16>
    %c1 = arith.constant 1 : index
    %c0_10 = arith.constant 0 : index
    %c0_11 = arith.constant 0 : index
    %12 = vector.load %arg3[%c1, %c0_10, %c0_11] : memref<3x128x128xbf16, #tpu.memory_space<vmem>>, vector<1x128x128xbf16>
    %13 = vector.shape_cast %12 : vector<1x128x128xbf16> to vector<128x128xbf16>
    %cst_12 = arith.constant dense<0.000000e+00> : vector<128x128xf32>
    %14 = tpu.matmul %11, %13, %cst_12 {dimension_numbers = #tpu.dot_dimension_numbers<[1], [0], [0], [1], [0, 0, 1, 1], [], []>} : vector<128x128xbf16>, vector<128x128xbf16>, vector<128x128xf32> -> vector<128x128xf32>
    %15 = arith.truncf %14 : vector<128x128xf32> to vector<128x128xbf16>
    %cst_13 = arith.constant dense<0.000000e+00> : vector<128x128xf32>
    %16 = tpu.matmul %1, %15, %cst_13 {dimension_numbers = #tpu.dot_dimension_numbers<[1], [0], [0], [1], [0, 0, 1, 1], [], []>} : vector<128x128xbf16>, vector<128x128xbf16>, vector<128x128xf32> -> vector<128x128xf32>
    %c1_14 = arith.constant 1 : index
    %c0_15 = arith.constant 0 : index
    %c0_16 = arith.constant 0 : index
    %17 = vector.load %arg4[%c1_14, %c0_15, %c0_16] : memref<3x1x128xf32, #tpu.memory_space<vmem>>, vector<1x1x128xf32>
    %18 = vector.shape_cast %17 : vector<1x1x128xf32> to vector<1x128xf32>
    %19 = vector.broadcast %18 : vector<1x128xf32> to vector<128x128xf32>
    %20 = arith.addf %16, %19 : vector<128x128xf32>
    %21 = arith.truncf %20 : vector<128x128xf32> to vector<128x128xbf16>
    %c2 = arith.constant 2 : index
    %c0_17 = arith.constant 0 : index
    %c0_18 = arith.constant 0 : index
    %22 = vector.load %arg3[%c2, %c0_17, %c0_18] : memref<3x128x128xbf16, #tpu.memory_space<vmem>>, vector<1x128x128xbf16>
    %23 = vector.shape_cast %22 : vector<1x128x128xbf16> to vector<128x128xbf16>
    %cst_19 = arith.constant dense<0.000000e+00> : vector<128x128xf32>
    %24 = tpu.matmul %21, %23, %cst_19 {dimension_numbers = #tpu.dot_dimension_numbers<[1], [0], [0], [1], [0, 0, 1, 1], [], []>} : vector<128x128xbf16>, vector<128x128xbf16>, vector<128x128xf32> -> vector<128x128xf32>
    %25 = arith.truncf %24 : vector<128x128xf32> to vector<128x128xbf16>
    %cst_20 = arith.constant dense<0.000000e+00> : vector<128x128xf32>
    %26 = tpu.matmul %1, %25, %cst_20 {dimension_numbers = #tpu.dot_dimension_numbers<[1], [0], [0], [1], [0, 0, 1, 1], [], []>} : vector<128x128xbf16>, vector<128x128xbf16>, vector<128x128xf32> -> vector<128x128xf32>
    %c2_21 = arith.constant 2 : index
    %c0_22 = arith.constant 0 : index
    %c0_23 = arith.constant 0 : index
    %27 = vector.load %arg4[%c2_21, %c0_22, %c0_23] : memref<3x1x128xf32, #tpu.memory_space<vmem>>, vector<1x1x128xf32>
    %28 = vector.shape_cast %27 : vector<1x1x128xf32> to vector<1x128xf32>
    %29 = vector.broadcast %28 : vector<1x128xf32> to vector<128x128xf32>
    %30 = arith.addf %26, %29 : vector<128x128xf32>
    %31 = arith.truncf %30 : vector<128x128xf32> to vector<128x128xbf16>
    %c0_24 = arith.constant 0 : index
    %c0_25 = arith.constant 0 : index
    %32 = vector.load %arg5[%c0_24, %c0_25] : memref<16x128xbf16, #tpu.memory_space<vmem>>, vector<16x128xbf16>
    %cst_26 = arith.constant dense<0.000000e+00> : vector<16x128xf32>
    %33 = tpu.matmul %32, %31, %cst_26 {dimension_numbers = #tpu.dot_dimension_numbers<[1], [0], [0], [1], [0, 0, 1, 1], [], []>} : vector<16x128xbf16>, vector<128x128xbf16>, vector<16x128xf32> -> vector<16x128xf32>
    %c0_27 = arith.constant 0 : index
    %c0_28 = arith.constant 0 : index
    %34 = vector.load %arg6[%c0_27, %c0_28] : memref<16x128xf32, #tpu.memory_space<vmem>>, vector<16x128xf32>
    tpu.vector_store %arg6[%c0_27, %c0_28], %33 {strides = array<i32>} : memref<16x128xf32, #tpu.memory_space<vmem>>, vector<16x128xf32>,
    return
  }
  func.func @transform_0(%arg0: i32) -> (i32, i32) {
    %c0_i32 = arith.constant 0 : i32
    %c0_i32_0 = arith.constant 0 : i32
    %c0_i32_1 = arith.constant 0 : i32
    return %c0_i32, %c0_i32_0 : i32, i32
  }
  func.func @transform_1(%arg0: i32) -> (i32, i32) {
    %c0_i32 = arith.constant 0 : i32
    %c0_i32_0 = arith.constant 0 : i32
    %c0_i32_1 = arith.constant 0 : i32
    return %c0_i32, %c0_i32_0 : i32, i32
  }
  func.func @transform_2(%arg0: i32) -> (i32, i32, i32) {
    %c0_i32 = arith.constant 0 : i32
    %c0_i32_0 = arith.constant 0 : i32
    %c0_i32_1 = arith.constant 0 : i32
    %c0_i32_2 = arith.constant 0 : i32
    return %c0_i32, %c0_i32_0, %c0_i32_1 : i32, i32, i32
  }
  func.func @transform_3(%arg0: i32) -> (i32, i32, i32) {
    %c0_i32 = arith.constant 0 : i32
    %c0_i32_0 = arith.constant 0 : i32
    %c0_i32_1 = arith.constant 0 : i32
    %c0_i32_2 = arith.constant 0 : i32
    return %c0_i32, %c0_i32_0, %c0_i32_1 : i32, i32, i32
  }
  func.func @transform_4(%arg0: i32) -> (i32, i32) {
    %c0_i32 = arith.constant 0 : i32
    %c0_i32_0 = arith.constant 0 : i32
    %c0_i32_1 = arith.constant 0 : i32
    return %c0_i32, %c0_i32_0 : i32, i32
  }
  func.func @transform_5(%arg0: i32) -> (i32, i32) {
    %c0_i32 = arith.constant 0 : i32
    %c0_i32_0 = arith.constant 0 : i32
    %c0_i32_1 = arith.constant 0 : i32
    return %c0_i32, %c0_i32_0 : i32, i32
  }
}

</mosaic_0001>

<llo_original>
// kernel: squeeze.1
$region0: #{squeeze.1}
  %s0 = inlined_call_operand.vmem [shape: f32[16], index: 0, kind: input, shape index: {}]
  %s1 = inlined_call_operand.hbm [shape: f32[2,8], index: 1, kind: output, shape index: {}]
  $region1: #{squeeze.1} parent=0
    #allocation0 [shape = 'u8[1024]{0}', space=vmem, size = 0x400, scoped, tag = 'operand span for operand 1']
    #allocation1 [shape = 's32[1]{0}', space=sflag, size = 0x4, scoped, tag = 'scoped memory for squeeze.1']
    #allocation2 [shape = 'u8[4096]{0}', space=vmem, size = 0x1000, scoped, tag = 'scoped mem for output reshape']
    #allocation3 [shape = 'u8[4096]{0}', space=vmem, size = 0x1000, scoped, tag = 'scoped mem for input reshape']
    %2 = vsyncpa [#allocation1], 0
    %s4 = ssub.s32 2, 1
    %v5 = vld [vmem:[%s0] sm:%s4]
    %6 = vst [vmem:[#allocation3] sm:%s4] %v5
    %v7 = vld [vmem:[#allocation3] sm:$0x1]
    %vm8 = vcmask 64512
    %9 = vst.msk [vmem:[#allocation2] sm:$0x1] %vm8, %v7
    %v10 = vld [vmem:[#allocation3] sm:$0x1]
    %11 = vrot.lane.b32.xlu0 %v10, 120
    %v12 = vpop.permute.xlu0 %11
    %vm13 = vcmask 64512
    %s14 = scalar_lea.vmem [#allocation2], 1
    %15 = vst.msk [vmem:[%s14] sm:$0x1] %vm13, %v12
    %s17 = ssub.s32 4, 1
    %v18 = vld [vmem:[#allocation2] sm:%s17]
    %s20 = ssub.s32 4, 1
    %21 = vst [vmem:[#allocation0] sm:%s20] %v18
    %23 = vsyncadd [#allocation1], 0
    %s25 = sshll.u32 [#allocation0], 4
    %s26 = int_to_ptr.vmem [resolvable:$true] %s25
    %s27 = sshll.u32 %s1, 4
    %s28 = int_to_ptr.hbm [resolvable:$true] %s27
    %30 = dma.vmem_to_hbm [thread:$0]  %s26, 32, %s28, [#allocation1]
    %32 = dma.done [#allocation1], 32
    %33 = vsyncpa [#allocation1], 1

// kernel: _device_forward.1
$region0: #{_device_forward.1}
  #allocation0 [shape = 'u32[]', space=smem, size = 0x4, offset = 0x4, fixed_abs, tag = 'smem constant byte address 0x4 - core index']
  #allocation1 [shape = 'u32[72,128]{1,0:T(1,128)}', space=vmem, size = 0x9000, scoped, tag = 'internal scratch']
  %s0 = inlined_call_operand.hbm [shape: bf16[128,128], index: 0, kind: input, shape index: {}]
  %s1 = inlined_call_operand.hbm [shape: bf16[128,128], index: 1, kind: input, shape index: {}]
  %s2 = inlined_call_operand.hbm [shape: bf16[3,128,128], index: 2, kind: input, shape index: {}]
  %s3 = inlined_call_operand.hbm [shape: f32[3,1,128], index: 3, kind: input, shape index: {}]
  %s4 = inlined_call_operand.hbm [shape: bf16[16,128], index: 4, kind: input, shape index: {}]
  %s5 = inlined_call_operand.vmem [shape: f32[16,128], index: 5, kind: output, shape index: {}]
  %s6 = sld [smem:[#allocation0]]
  $region50: #{_device_forward.1} parent=0
    _
  %s8 = ssub.s32 1, %s6
  %s9 = scalar_select 0, %s8, %s6
  $region1: #{_device_forward.1} parent=0
    #allocation2 [shape = 'u8[32768]{0}', space=vmem, size = 0x8000, scoped, tag = 'input window, operand 0, single buffered']
    #allocation3 [shape = 's32[1]{0}', space=sflag, size = 0x4, scoped, tag = 'scoped memory for _device_forward.1']
    #allocation4 [shape = 'u8[32768]{0}', space=vmem, size = 0x8000, scoped, tag = 'input window, operand 1, single buffered']
    #allocation5 [shape = 's32[1]{0}', space=sflag, size = 0x4, scoped, tag = 'scoped memory for _device_forward.1']
    #allocation6 [shape = 'u8[98304]{0}', space=vmem, size = 0x18000, scoped, tag = 'input window, operand 2, single buffered']
    #allocation7 [shape = 'u8[1536]{0}', space=vmem, size = 0x800, scoped, tag = 'input window, operand 3, single buffered']
    #allocation8 [shape = 's32[1]{0}', space=sflag, size = 0x4, scoped, tag = 'scoped memory for _device_forward.1']
    #allocation9 [shape = 'u8[4096]{0}', space=vmem, size = 0x1000, scoped, tag = 'input window, operand 4, single buffered']
    %10 = vsyncpa [#allocation3], 0
    %11 = vsyncpa [#allocation5], 0
    %12 = vsyncpa [#allocation8], 0
    // Predicated region
    $region2: #{_device_forward.1} parent=1 // pred_check
      _
    $region3: #{_device_forward.1} parent=1 // pred_check_branch
      %14 = sbr.rel (0) target = $region5
    $region4: #{_device_forward.1} parent=1 // pred_region
      %16 = vsyncadd [#allocation3], 0
      %s17 = sshll.u32 %s0, 4
      %s18 = int_to_ptr.hbm [resolvable:$true] %s17
      %s19 = sshll.u32 [#allocation2], 4
      %s20 = int_to_ptr.vmem [resolvable:$true] %s19
      %25 = dma.hbm_to_vmem [thread:$0]  %s18, 1024, %s20, [#allocation3], 64, 64, 4
    $region5: #{_device_forward.1} parent=1 // pred_fallthru
      _
    // Predicated region
    $region6: #{_device_forward.1} parent=1 // pred_check
      _
    $region7: #{_device_forward.1} parent=1 // pred_check_branch
      %27 = sbr.rel (0) target = $region9
    $region8: #{_device_forward.1} parent=1 // pred_region
      %29 = vsyncadd [#allocation5], 0
      %s30 = sshll.u32 %s1, 4
      %s31 = int_to_ptr.hbm [resolvable:$true] %s30
      %s32 = sshll.u32 [#allocation4], 4
      %s33 = int_to_ptr.vmem [resolvable:$true] %s32
      %38 = dma.hbm_to_vmem [thread:$0]  %s31, 1024, %s33, [#allocation5], 64, 64, 4
    $region9: #{_device_forward.1} parent=1 // pred_fallthru
      _
    // Predicated region
    $region10: #{_device_forward.1} parent=1 // pred_check
      _
    $region11: #{_device_forward.1} parent=1 // pred_check_branch
      %40 = sbr.rel (0) target = $region13
    $region12: #{_device_forward.1} parent=1 // pred_region
      %42 = vsyncadd [#allocation5], 0
      %s43 = sshll.u32 %s2, 4
      %s44 = int_to_ptr.hbm [resolvable:$true] %s43
      %s45 = sshll.u32 [#allocation6], 4
      %s46 = int_to_ptr.vmem [resolvable:$true] %s45
      %51 = dma.hbm_to_vmem [thread:$0]  %s44, 3072, %s46, [#allocation5], 64, 64, 4
    $region13: #{_device_forward.1} parent=1 // pred_fallthru
      _
    // Predicated region
    $region14: #{_device_forward.1} parent=1 // pred_check
      _
    $region15: #{_device_forward.1} parent=1 // pred_check_branch
      %53 = sbr.rel (0) target = $region17
    $region16: #{_device_forward.1} parent=1 // pred_region
      %55 = vsyncadd [#allocation8], 0
      %s56 = sshll.u32 %s3, 4
      %s57 = int_to_ptr.hbm [resolvable:$true] %s56
      %s58 = sshll.u32 [#allocation7], 4
      %s59 = int_to_ptr.vmem [resolvable:$true] %s58
      %64 = dma.hbm_to_vmem [thread:$0]  %s57, 48, %s59, [#allocation8], 16, 16, 1
    $region17: #{_device_forward.1} parent=1 // pred_fallthru
      _
    // Predicated region
    $region18: #{_device_forward.1} parent=1 // pred_check
      _
    $region19: #{_device_forward.1} parent=1 // pred_check_branch
      %66 = sbr.rel (0) target = $region21
    $region20: #{_device_forward.1} parent=1 // pred_region
      %68 = vsyncadd [#allocation8], 0
      %s69 = sshll.u32 %s4, 4
      %s70 = int_to_ptr.hbm [resolvable:$true] %s69
      %s71 = sshll.u32 [#allocation9], 4
      %s72 = int_to_ptr.vmem [resolvable:$true] %s71
      %77 = dma.hbm_to_vmem [thread:$0]  %s70, 128, %s72, [#allocation8], 64, 64, 4
    $region21: #{_device_forward.1} parent=1 // pred_fallthru
      _
    // Predicated region
    $region22: #{_device_forward.1} parent=1 // pred_check
      _
    $region23: #{_device_forward.1} parent=1 // pred_check_branch
      %79 = sbr.rel (0) target = $region25
    $region24: #{_device_forward.1} parent=1 // pred_region
      %81 = dma.done [#allocation3], 1024
    $region25: #{_device_forward.1} parent=1 // pred_fallthru
      _
    // Predicated region
    $region26: #{_device_forward.1} parent=1 // pred_check
      _
    $region27: #{_device_forward.1} parent=1 // pred_check_branch
      %83 = sbr.rel (0) target = $region29
    $region28: #{_device_forward.1} parent=1 // pred_region
      %85 = dma.done [#allocation5], 1024
    $region29: #{_device_forward.1} parent=1 // pred_fallthru
      _
    // Predicated region
    $region30: #{_device_forward.1} parent=1 // pred_check
      _
    $region31: #{_device_forward.1} parent=1 // pred_check_branch
      %87 = sbr.rel (0) target = $region33
    $region32: #{_device_forward.1} parent=1 // pred_region
      %89 = dma.done [#allocation5], 3072
    $region33: #{_device_forward.1} parent=1 // pred_fallthru
      _
    // Predicated region
    $region34: #{_device_forward.1} parent=1 // pred_check
      _
    $region35: #{_device_forward.1} parent=1 // pred_check_branch
      %91 = sbr.rel (0) target = $region37
    $region36: #{_device_forward.1} parent=1 // pred_region
      %93 = dma.done [#allocation8], 48
    $region37: #{_device_forward.1} parent=1 // pred_fallthru
      _
    // Predicated region
    $region38: #{_device_forward.1} parent=1 // pred_check
      _
    $region39: #{_device_forward.1} parent=1 // pred_check_branch
      %95 = sbr.rel (0) target = $region41
    $region40: #{_device_forward.1} parent=1 // pred_region
      %97 = dma.done [#allocation8], 128
    $region41: #{_device_forward.1} parent=1 // pred_fallthru
      _
    %v98 = vld [vmem:[#allocation2] sm:$0xf]
    %v99 = vld [vmem:[#allocation2 + $0x4] sm:$0xf]
    %v100 = vld [vmem:[#allocation2 + $0x8] sm:$0xf]
    %v101 = vld [vmem:[#allocation2 + $0xc] sm:$0xf]
    %v102 = vld [vmem:[#allocation2 + $0x10] sm:$0xf]
    %v103 = vld [vmem:[#allocation2 + $0x14] sm:$0xf]
    %v104 = vld [vmem:[#allocation2 + $0x18] sm:$0xf]
    %v105 = vld [vmem:[#allocation2 + $0x1c] sm:$0xf]
    %v106 = vld [vmem:[#allocation2 + $0x20] sm:$0xf]
    %v107 = vld [vmem:[#allocation2 + $0x24] sm:$0xf]
    %v108 = vld [vmem:[#allocation2 + $0x28] sm:$0xf]
    %v109 = vld [vmem:[#allocation2 + $0x2c] sm:$0xf]
    %v110 = vld [vmem:[#allocation2 + $0x30] sm:$0xf]
    %v111 = vld [vmem:[#allocation2 + $0x34] sm:$0xf]
    %v112 = vld [vmem:[#allocation2 + $0x38] sm:$0xf]
    %v113 = vld [vmem:[#allocation2 + $0x3c] sm:$0xf]
    %v114 = vld [vmem:[#allocation4] sm:$0xf]
    %v115 = vld [vmem:[#allocation4 + $0x4] sm:$0xf]
    %v116 = vld [vmem:[#allocation4 + $0x8] sm:$0xf]
    %v117 = vld [vmem:[#allocation4 + $0xc] sm:$0xf]
    %v118 = vld [vmem:[#allocation4 + $0x10] sm:$0xf]
    %v119 = vld [vmem:[#allocation4 + $0x14] sm:$0xf]
    %v120 = vld [vmem:[#allocation4 + $0x18] sm:$0xf]
    %v121 = vld [vmem:[#allocation4 + $0x1c] sm:$0xf]
    %v122 = vld [vmem:[#allocation4 + $0x20] sm:$0xf]
    %v123 = vld [vmem:[#allocation4 + $0x24] sm:$0xf]
    %v124 = vld [vmem:[#allocation4 + $0x28] sm:$0xf]
    %v125 = vld [vmem:[#allocation4 + $0x2c] sm:$0xf]
    %v126 = vld [vmem:[#allocation4 + $0x30] sm:$0xf]
    %v127 = vld [vmem:[#allocation4 + $0x34] sm:$0xf]
    %v128 = vld [vmem:[#allocation4 + $0x38] sm:$0xf]
    %v129 = vld [vmem:[#allocation4 + $0x3c] sm:$0xf]
    %v130 = vld [vmem:[#allocation6] sm:$0xf]
    %v131 = vld [vmem:[#allocation6 + $0x4] sm:$0xf]
    %v132 = vld [vmem:[#allocation6 + $0x8] sm:$0xf]
    %v133 = vld [vmem:[#allocation6 + $0xc] sm:$0xf]
    %v134 = vld [vmem:[#allocation6 + $0x10] sm:$0xf]
    %v135 = vld [vmem:[#allocation6 + $0x14] sm:$0xf]
    %v136 = vld [vmem:[#allocation6 + $0x18] sm:$0xf]
    %v137 = vld [vmem:[#allocation6 + $0x1c] sm:$0xf]
    %v138 = vld [vmem:[#allocation6 + $0x20] sm:$0xf]
    %v139 = vld [vmem:[#allocation6 + $0x24] sm:$0xf]
    %v140 = vld [vmem:[#allocation6 + $0x28] sm:$0xf]
    %v141 = vld [vmem:[#allocation6 + $0x2c] sm:$0xf]
    %v142 = vld [vmem:[#allocation6 + $0x30] sm:$0xf]
    %v143 = vld [vmem:[#allocation6 + $0x34] sm:$0xf]
    %v144 = vld [vmem:[#allocation6 + $0x38] sm:$0xf]
    %v145 = vld [vmem:[#allocation6 + $0x3c] sm:$0xf]
    %v162 = vunpack.c.l.b16 %v98
    %v163 = vunpack.c.l.b16 %v99
    %v164 = vunpack.c.l.b16 %v100
    %v165 = vunpack.c.l.b16 %v101
    %v166 = vunpack.c.l.b16 %v102
    %v167 = vunpack.c.l.b16 %v103
    %v168 = vunpack.c.l.b16 %v104
    %v169 = vunpack.c.l.b16 %v105
    %v170 = vunpack.c.l.b16 %v106
    %v171 = vunpack.c.l.b16 %v107
    %v172 = vunpack.c.l.b16 %v108
    %v173 = vunpack.c.l.b16 %v109
    %v174 = vunpack.c.l.b16 %v110
    %v175 = vunpack.c.l.b16 %v111
    %v176 = vunpack.c.l.b16 %v112
    %v177 = vunpack.c.l.b16 %v113
    %v178 = vpack.c.b16 %v163, %v162
    %v179 = vpack.c.b16 %v165, %v164
    %v180 = vpack.c.b16 %v167, %v166
    %v181 = vpack.c.b16 %v169, %v168
    %v182 = vpack.c.b16 %v171, %v170
    %v183 = vpack.c.b16 %v173, %v172
    %v184 = vpack.c.b16 %v175, %v174
    %v185 = vpack.c.b16 %v177, %v176
    %v210 = vunpack.c.l.b16 %v130
    %v211 = vunpack.c.l.b16 %v131
    %v212 = vunpack.c.l.b16 %v132
    %v213 = vunpack.c.l.b16 %v133
    %v214 = vunpack.c.l.b16 %v134
    %v215 = vunpack.c.l.b16 %v135
    %v216 = vunpack.c.l.b16 %v136
    %v217 = vunpack.c.l.b16 %v137
    %v218 = vunpack.c.l.b16 %v138
    %v219 = vunpack.c.l.b16 %v139
    %v220 = vunpack.c.l.b16 %v140
    %v221 = vunpack.c.l.b16 %v141
    %v222 = vunpack.c.l.b16 %v142
    %v223 = vunpack.c.l.b16 %v143
    %v224 = vunpack.c.l.b16 %v144
    %v225 = vunpack.c.l.b16 %v145
    %v226 = vpack.c.b16 %v211, %v210
    %v227 = vpack.c.b16 %v213, %v212
    %v228 = vpack.c.b16 %v215, %v214
    %v229 = vpack.c.b16 %v217, %v216
    %v230 = vpack.c.b16 %v219, %v218
    %v231 = vpack.c.b16 %v221, %v220
    %v232 = vpack.c.b16 %v223, %v222
    %v233 = vpack.c.b16 %v225, %v224
    %242 = vmatpush.bf16.msra.mxu0 %v233
    %243 = vmatpush.bf16.msra.mxu0 %v232
    %244 = vmatpush.bf16.msra.mxu0 %v231
    %245 = vmatpush.bf16.msra.mxu0 %v230
    %246 = vmatpush.bf16.msra.mxu0 %v229
    %247 = vmatpush.bf16.msra.mxu0 %v228
    %248 = vmatpush.bf16.msra.mxu0 %v227
    %249 = vmatpush.bf16.msra.mxu0 %v226
    %250 = vmatmul.bf16.gmra.mxu0 %v178
    %v251 = vpop.f32.mrf.mxu0
    %v252 = vadd.f32 0.0, %v251
    %v253 = vpop.f32.mrf.mxu0
    %v254 = vadd.f32 0.0, %v253
    %255 = vmatmul.bf16.gmra.mxu0 %v179
    %v256 = vpop.f32.mrf.mxu0
    %v257 = vadd.f32 0.0, %v256
    %v258 = vpop.f32.mrf.mxu0
    %v259 = vadd.f32 0.0, %v258
    %260 = vmatmul.bf16.gmra.mxu0 %v180
    %v261 = vpop.f32.mrf.mxu0
    %v262 = vadd.f32 0.0, %v261
    %v263 = vpop.f32.mrf.mxu0
    %v264 = vadd.f32 0.0, %v263
    %265 = vmatmul.bf16.gmra.mxu0 %v181
    %v266 = vpop.f32.mrf.mxu0
    %v267 = vadd.f32 0.0, %v266
    %v268 = vpop.f32.mrf.mxu0
    %v269 = vadd.f32 0.0, %v268
    %270 = vmatmul.bf16.gmra.mxu0 %v182
    %v271 = vpop.f32.mrf.mxu0
    %v272 = vadd.f32 0.0, %v271
    %v273 = vpop.f32.mrf.mxu0
    %v274 = vadd.f32 0.0, %v273
    %275 = vmatmul.bf16.gmra.mxu0 %v183
    %v276 = vpop.f32.mrf.mxu0
    %v277 = vadd.f32 0.0, %v276
    %v278 = vpop.f32.mrf.mxu0
    %v279 = vadd.f32 0.0, %v278
    %280 = vmatmul.bf16.gmra.mxu0 %v184
    %v281 = vpop.f32.mrf.mxu0
    %v282 = vadd.f32 0.0, %v281
    %v283 = vpop.f32.mrf.mxu0
    %v284 = vadd.f32 0.0, %v283
    %285 = vmatmul.bf16.gmra.mxu0 %v185
    %v286 = vpop.f32.mrf.mxu0
    %v287 = vadd.f32 0.0, %v286
    %v288 = vpop.f32.mrf.mxu0
    %v289 = vadd.f32 0.0, %v288
    %290 = vdwg.mxu0
    %v291 = vpack.c.bf16 %v254, %v252
    %v292 = vpack.c.bf16 %v259, %v257
    %v293 = vpack.c.bf16 %v264, %v262
    %v294 = vpack.c.bf16 %v269, %v267
    %v295 = vpack.c.bf16 %v274, %v272
    %v296 = vpack.c.bf16 %v279, %v277
    %v297 = vpack.c.bf16 %v284, %v282
    %v298 = vpack.c.bf16 %v289, %v287
    %v299 = vld [vmem:[#allocation7] sm:$0x1]
    %v301 = vperm.slane %v299, 0
    %v319 = vunpack.c.l.b16 %v114
    %v320 = vunpack.c.l.b16 %v115
    %v321 = vunpack.c.l.b16 %v116
    %v322 = vunpack.c.l.b16 %v117
    %v323 = vunpack.c.l.b16 %v118
    %v324 = vunpack.c.l.b16 %v119
    %v325 = vunpack.c.l.b16 %v120
    %v326 = vunpack.c.l.b16 %v121
    %v327 = vunpack.c.l.b16 %v122
    %v328 = vunpack.c.l.b16 %v123
    %v329 = vunpack.c.l.b16 %v124
    %v330 = vunpack.c.l.b16 %v125
    %v331 = vunpack.c.l.b16 %v126
    %v332 = vunpack.c.l.b16 %v127
    %v333 = vunpack.c.l.b16 %v128
    %v334 = vunpack.c.l.b16 %v129
    %v335 = vpack.c.b16 %v320, %v319
    %v336 = vpack.c.b16 %v322, %v321
    %v337 = vpack.c.b16 %v324, %v323
    %v338 = vpack.c.b16 %v326, %v325
    %v339 = vpack.c.b16 %v328, %v327
    %v340 = vpack.c.b16 %v330, %v329
    %v341 = vpack.c.b16 %v332, %v331
    %v342 = vpack.c.b16 %v334, %v333
    %351 = vmatpush.bf16.msra.mxu0 %v298
    %352 = vmatpush.bf16.msra.mxu0 %v297
    %353 = vmatpush.bf16.msra.mxu0 %v296
    %354 = vmatpush.bf16.msra.mxu0 %v295
    %355 = vmatpush.bf16.msra.mxu0 %v294
    %356 = vmatpush.bf16.msra.mxu0 %v293
    %357 = vmatpush.bf16.msra.mxu0 %v292
    %358 = vmatpush.bf16.msra.mxu0 %v291
    %359 = vmatmul.bf16.gmra.mxu0 %v335
    %v360 = vpop.f32.mrf.mxu0
    %v361 = vadd.f32 %v301, %v360
    %v362 = vpop.f32.mrf.mxu0
    %v363 = vadd.f32 %v301, %v362
    %364 = vmatmul.bf16.gmra.mxu0 %v336
    %v365 = vpop.f32.mrf.mxu0
    %v366 = vadd.f32 %v301, %v365
    %v367 = vpop.f32.mrf.mxu0
    %v368 = vadd.f32 %v301, %v367
    %369 = vmatmul.bf16.gmra.mxu0 %v337
    %v370 = vpop.f32.mrf.mxu0
    %v371 = vadd.f32 %v301, %v370
    %v372 = vpop.f32.mrf.mxu0
    %v373 = vadd.f32 %v301, %v372
    %374 = vmatmul.bf16.gmra.mxu0 %v338
    %v375 = vpop.f32.mrf.mxu0
    %v376 = vadd.f32 %v301, %v375
    %v377 = vpop.f32.mrf.mxu0
    %v378 = vadd.f32 %v301, %v377
    %379 = vmatmul.bf16.gmra.mxu0 %v339
    %v380 = vpop.f32.mrf.mxu0
    %v381 = vadd.f32 %v301, %v380
    %v382 = vpop.f32.mrf.mxu0
    %v383 = vadd.f32 %v301, %v382
    %384 = vmatmul.bf16.gmra.mxu0 %v340
    %v385 = vpop.f32.mrf.mxu0
    %v386 = vadd.f32 %v301, %v385
    %v387 = vpop.f32.mrf.mxu0
    %v388 = vadd.f32 %v301, %v387
    %389 = vmatmul.bf16.gmra.mxu0 %v341
    %v390 = vpop.f32.mrf.mxu0
    %v391 = vadd.f32 %v301, %v390
    %v392 = vpop.f32.mrf.mxu0
    %v393 = vadd.f32 %v301, %v392
    %394 = vmatmul.bf16.gmra.mxu0 %v342
    %v395 = vpop.f32.mrf.mxu0
    %v396 = vadd.f32 %v301, %v395
    %v397 = vpop.f32.mrf.mxu0
    %v398 = vadd.f32 %v301, %v397
    %399 = vdwg.mxu0
    %v400 = vpack.c.bf16 %v363, %v361
    %v401 = vpack.c.bf16 %v368, %v366
    %v402 = vpack.c.bf16 %v373, %v371
    %v403 = vpack.c.bf16 %v378, %v376
    %v404 = vpack.c.bf16 %v383, %v381
    %v405 = vpack.c.bf16 %v388, %v386
    %v406 = vpack.c.bf16 %v393, %v391
    %v407 = vpack.c.bf16 %v398, %v396
    %s408 = scalar_lea.vmem [#allocation6], 64
    %v409 = vld [vmem:[%s408] sm:$0xf]
    %v410 = vld [vmem:[%s408 + $0x4] sm:$0xf]
    %v411 = vld [vmem:[%s408 + $0x8] sm:$0xf]
    %v412 = vld [vmem:[%s408 + $0xc] sm:$0xf]
    %v413 = vld [vmem:[%s408 + $0x10] sm:$0xf]
    %v414 = vld [vmem:[%s408 + $0x14] sm:$0xf]
    %v415 = vld [vmem:[%s408 + $0x18] sm:$0xf]
    %v416 = vld [vmem:[%s408 + $0x1c] sm:$0xf]
    %v417 = vld [vmem:[%s408 + $0x20] sm:$0xf]
    %v418 = vld [vmem:[%s408 + $0x24] sm:$0xf]
    %v419 = vld [vmem:[%s408 + $0x28] sm:$0xf]
    %v420 = vld [vmem:[%s408 + $0x2c] sm:$0xf]
    %v421 = vld [vmem:[%s408 + $0x30] sm:$0xf]
    %v422 = vld [vmem:[%s408 + $0x34] sm:$0xf]
    %v423 = vld [vmem:[%s408 + $0x38] sm:$0xf]
    %v424 = vld [vmem:[%s408 + $0x3c] sm:$0xf]
    %v441 = vunpack.c.l.b16 %v409
    %v442 = vunpack.c.l.b16 %v410
    %v443 = vunpack.c.l.b16 %v411
    %v444 = vunpack.c.l.b16 %v412
    %v445 = vunpack.c.l.b16 %v413
    %v446 = vunpack.c.l.b16 %v414
    %v447 = vunpack.c.l.b16 %v415
    %v448 = vunpack.c.l.b16 %v416
    %v449 = vunpack.c.l.b16 %v417
    %v450 = vunpack.c.l.b16 %v418
    %v451 = vunpack.c.l.b16 %v419
    %v452 = vunpack.c.l.b16 %v420
    %v453 = vunpack.c.l.b16 %v421
    %v454 = vunpack.c.l.b16 %v422
    %v455 = vunpack.c.l.b16 %v423
    %v456 = vunpack.c.l.b16 %v424
    %v457 = vpack.c.b16 %v442, %v441
    %v458 = vpack.c.b16 %v444, %v443
    %v459 = vpack.c.b16 %v446, %v445
    %v460 = vpack.c.b16 %v448, %v447
    %v461 = vpack.c.b16 %v450, %v449
    %v462 = vpack.c.b16 %v452, %v451
    %v463 = vpack.c.b16 %v454, %v453
    %v464 = vpack.c.b16 %v456, %v455
    %473 = vmatpush.bf16.msra.mxu0 %v464
    %474 = vmatpush.bf16.msra.mxu0 %v463
    %475 = vmatpush.bf16.msra.mxu0 %v462
    %476 = vmatpush.bf16.msra.mxu0 %v461
    %477 = vmatpush.bf16.msra.mxu0 %v460
    %478 = vmatpush.bf16.msra.mxu0 %v459
    %479 = vmatpush.bf16.msra.mxu0 %v458
    %480 = vmatpush.bf16.msra.mxu0 %v457
    %481 = vmatmul.bf16.gmra.mxu0 %v400
    %v482 = vpop.f32.mrf.mxu0
    %v483 = vadd.f32 0.0, %v482
    %v484 = vpop.f32.mrf.mxu0
    %v485 = vadd.f32 0.0, %v484
    %486 = vmatmul.bf16.gmra.mxu0 %v401
    %v487 = vpop.f32.mrf.mxu0
    %v488 = vadd.f32 0.0, %v487
    %v489 = vpop.f32.mrf.mxu0
    %v490 = vadd.f32 0.0, %v489
    %491 = vmatmul.bf16.gmra.mxu0 %v402
    %v492 = vpop.f32.mrf.mxu0
    %v493 = vadd.f32 0.0, %v492
    %v494 = vpop.f32.mrf.mxu0
    %v495 = vadd.f32 0.0, %v494
    %496 = vmatmul.bf16.gmra.mxu0 %v403
    %v497 = vpop.f32.mrf.mxu0
    %v498 = vadd.f32 0.0, %v497
    %v499 = vpop.f32.mrf.mxu0
    %v500 = vadd.f32 0.0, %v499
    %501 = vmatmul.bf16.gmra.mxu0 %v404
    %v502 = vpop.f32.mrf.mxu0
    %v503 = vadd.f32 0.0, %v502
    %v504 = vpop.f32.mrf.mxu0
    %v505 = vadd.f32 0.0, %v504
    %506 = vmatmul.bf16.gmra.mxu0 %v405
    %v507 = vpop.f32.mrf.mxu0
    %v508 = vadd.f32 0.0, %v507
    %v509 = vpop.f32.mrf.mxu0
    %v510 = vadd.f32 0.0, %v509
    %511 = vmatmul.bf16.gmra.mxu0 %v406
    %v512 = vpop.f32.mrf.mxu0
    %v513 = vadd.f32 0.0, %v512
    %v514 = vpop.f32.mrf.mxu0
    %v515 = vadd.f32 0.0, %v514
    %516 = vmatmul.bf16.gmra.mxu0 %v407
    %v517 = vpop.f32.mrf.mxu0
    %v518 = vadd.f32 0.0, %v517
    %v519 = vpop.f32.mrf.mxu0
    %v520 = vadd.f32 0.0, %v519
    %521 = vdwg.mxu0
    %v522 = vpack.c.bf16 %v485, %v483
    %v523 = vpack.c.bf16 %v490, %v488
    %v524 = vpack.c.bf16 %v495, %v493
    %v525 = vpack.c.bf16 %v500, %v498
    %v526 = vpack.c.bf16 %v505, %v503
    %v527 = vpack.c.bf16 %v510, %v508
    %v528 = vpack.c.bf16 %v515, %v513
    %v529 = vpack.c.bf16 %v520, %v518
    %s530 = scalar_lea.vmem [#allocation7], 1
    %v531 = vld [vmem:[%s530] sm:$0x1]
    %v533 = vperm.slane %v531, 0
    %535 = vmatpush.bf16.msra.mxu0 %v529
    %536 = vmatpush.bf16.msra.mxu0 %v528
    %537 = vmatpush.bf16.msra.mxu0 %v527
    %538 = vmatpush.bf16.msra.mxu0 %v526
    %539 = vmatpush.bf16.msra.mxu0 %v525
    %540 = vmatpush.bf16.msra.mxu0 %v524
    %541 = vmatpush.bf16.msra.mxu0 %v523
    %542 = vmatpush.bf16.msra.mxu0 %v522
    %543 = vmatmul.bf16.gmra.mxu0 %v335
    %v544 = vpop.f32.mrf.mxu0
    %v545 = vadd.f32 %v533, %v544
    %v546 = vpop.f32.mrf.mxu0
    %v547 = vadd.f32 %v533, %v546
    %548 = vmatmul.bf16.gmra.mxu0 %v336
    %v549 = vpop.f32.mrf.mxu0
    %v550 = vadd.f32 %v533, %v549
    %v551 = vpop.f32.mrf.mxu0
    %v552 = vadd.f32 %v533, %v551
    %553 = vmatmul.bf16.gmra.mxu0 %v337
    %v554 = vpop.f32.mrf.mxu0
    %v555 = vadd.f32 %v533, %v554
    %v556 = vpop.f32.mrf.mxu0
    %v557 = vadd.f32 %v533, %v556
    %558 = vmatmul.bf16.gmra.mxu0 %v338
    %v559 = vpop.f32.mrf.mxu0
    %v560 = vadd.f32 %v533, %v559
    %v561 = vpop.f32.mrf.mxu0
    %v562 = vadd.f32 %v533, %v561
    %563 = vmatmul.bf16.gmra.mxu0 %v339
    %v564 = vpop.f32.mrf.mxu0
    %v565 = vadd.f32 %v533, %v564
    %v566 = vpop.f32.mrf.mxu0
    %v567 = vadd.f32 %v533, %v566
    %568 = vmatmul.bf16.gmra.mxu0 %v340
    %v569 = vpop.f32.mrf.mxu0
    %v570 = vadd.f32 %v533, %v569
    %v571 = vpop.f32.mrf.mxu0
    %v572 = vadd.f32 %v533, %v571
    %573 = vmatmul.bf16.gmra.mxu0 %v341
    %v574 = vpop.f32.mrf.mxu0
    %v575 = vadd.f32 %v533, %v574
    %v576 = vpop.f32.mrf.mxu0
    %v577 = vadd.f32 %v533, %v576
    %578 = vmatmul.bf16.gmra.mxu0 %v342
    %v579 = vpop.f32.mrf.mxu0
    %v580 = vadd.f32 %v533, %v579
    %v581 = vpop.f32.mrf.mxu0
    %v582 = vadd.f32 %v533, %v581
    %583 = vdwg.mxu0
    %v584 = vpack.c.bf16 %v547, %v545
    %v585 = vpack.c.bf16 %v552, %v550
    %v586 = vpack.c.bf16 %v557, %v555
    %v587 = vpack.c.bf16 %v562, %v560
    %v588 = vpack.c.bf16 %v567, %v565
    %v589 = vpack.c.bf16 %v572, %v570
    %v590 = vpack.c.bf16 %v577, %v575
    %v591 = vpack.c.bf16 %v582, %v580
    %s592 = scalar_lea.vmem [#allocation6], 128
    %v593 = vld [vmem:[%s592] sm:$0xf]
    %v594 = vld [vmem:[%s592 + $0x4] sm:$0xf]
    %v595 = vld [vmem:[%s592 + $0x8] sm:$0xf]
    %v596 = vld [vmem:[%s592 + $0xc] sm:$0xf]
    %v597 = vld [vmem:[%s592 + $0x10] sm:$0xf]
    %v598 = vld [vmem:[%s592 + $0x14] sm:$0xf]
    %v599 = vld [vmem:[%s592 + $0x18] sm:$0xf]
    %v600 = vld [vmem:[%s592 + $0x1c] sm:$0xf]
    %v601 = vld [vmem:[%s592 + $0x20] sm:$0xf]
    %v602 = vld [vmem:[%s592 + $0x24] sm:$0xf]
    %v603 = vld [vmem:[%s592 + $0x28] sm:$0xf]
    %v604 = vld [vmem:[%s592 + $0x2c] sm:$0xf]
    %v605 = vld [vmem:[%s592 + $0x30] sm:$0xf]
    %v606 = vld [vmem:[%s592 + $0x34] sm:$0xf]
    %v607 = vld [vmem:[%s592 + $0x38] sm:$0xf]
    %v608 = vld [vmem:[%s592 + $0x3c] sm:$0xf]
    %v625 = vunpack.c.l.b16 %v593
    %v626 = vunpack.c.l.b16 %v594
    %v627 = vunpack.c.l.b16 %v595
    %v628 = vunpack.c.l.b16 %v596
    %v629 = vunpack.c.l.b16 %v597
    %v630 = vunpack.c.l.b16 %v598
    %v631 = vunpack.c.l.b16 %v599
    %v632 = vunpack.c.l.b16 %v600
    %v633 = vunpack.c.l.b16 %v601
    %v634 = vunpack.c.l.b16 %v602
    %v635 = vunpack.c.l.b16 %v603
    %v636 = vunpack.c.l.b16 %v604
    %v637 = vunpack.c.l.b16 %v605
    %v638 = vunpack.c.l.b16 %v606
    %v639 = vunpack.c.l.b16 %v607
    %v640 = vunpack.c.l.b16 %v608
    %v641 = vpack.c.b16 %v626, %v625
    %v642 = vpack.c.b16 %v628, %v627
    %v643 = vpack.c.b16 %v630, %v629
    %v644 = vpack.c.b16 %v632, %v631
    %v645 = vpack.c.b16 %v634, %v633
    %v646 = vpack.c.b16 %v636, %v635
    %v647 = vpack.c.b16 %v638, %v637
    %v648 = vpack.c.b16 %v640, %v639
    %657 = vmatpush.bf16.msra.mxu0 %v648
    %658 = vmatpush.bf16.msra.mxu0 %v647
    %659 = vmatpush.bf16.msra.mxu0 %v646
    %660 = vmatpush.bf16.msra.mxu0 %v645
    %661 = vmatpush.bf16.msra.mxu0 %v644
    %662 = vmatpush.bf16.msra.mxu0 %v643
    %663 = vmatpush.bf16.msra.mxu0 %v642
    %664 = vmatpush.bf16.msra.mxu0 %v641
    %665 = vmatmul.bf16.gmra.mxu0 %v584
    %v666 = vpop.f32.mrf.mxu0
    %v667 = vadd.f32 0.0, %v666
    %v668 = vpop.f32.mrf.mxu0
    %v669 = vadd.f32 0.0, %v668
    %670 = vmatmul.bf16.gmra.mxu0 %v585
    %v671 = vpop.f32.mrf.mxu0
    %v672 = vadd.f32 0.0, %v671
    %v673 = vpop.f32.mrf.mxu0
    %v674 = vadd.f32 0.0, %v673
    %675 = vmatmul.bf16.gmra.mxu0 %v586
    %v676 = vpop.f32.mrf.mxu0
    %v677 = vadd.f32 0.0, %v676
    %v678 = vpop.f32.mrf.mxu0
    %v679 = vadd.f32 0.0, %v678
    %680 = vmatmul.bf16.gmra.mxu0 %v587
    %v681 = vpop.f32.mrf.mxu0
    %v682 = vadd.f32 0.0, %v681
    %v683 = vpop.f32.mrf.mxu0
    %v684 = vadd.f32 0.0, %v683
    %685 = vmatmul.bf16.gmra.mxu0 %v588
    %v686 = vpop.f32.mrf.mxu0
    %v687 = vadd.f32 0.0, %v686
    %v688 = vpop.f32.mrf.mxu0
    %v689 = vadd.f32 0.0, %v688
    %690 = vmatmul.bf16.gmra.mxu0 %v589
    %v691 = vpop.f32.mrf.mxu0
    %v692 = vadd.f32 0.0, %v691
    %v693 = vpop.f32.mrf.mxu0
    %v694 = vadd.f32 0.0, %v693
    %695 = vmatmul.bf16.gmra.mxu0 %v590
    %v696 = vpop.f32.mrf.mxu0
    %v697 = vadd.f32 0.0, %v696
    %v698 = vpop.f32.mrf.mxu0
    %v699 = vadd.f32 0.0, %v698
    %700 = vmatmul.bf16.gmra.mxu0 %v591
    %v701 = vpop.f32.mrf.mxu0
    %v702 = vadd.f32 0.0, %v701
    %v703 = vpop.f32.mrf.mxu0
    %v704 = vadd.f32 0.0, %v703
    %705 = vdwg.mxu0
    %v706 = vpack.c.bf16 %v669, %v667
    %v707 = vpack.c.bf16 %v674, %v672
    %v708 = vpack.c.bf16 %v679, %v677
    %v709 = vpack.c.bf16 %v684, %v682
    %v710 = vpack.c.bf16 %v689, %v687
    %v711 = vpack.c.bf16 %v694, %v692
    %v712 = vpack.c.bf16 %v699, %v697
    %v713 = vpack.c.bf16 %v704, %v702
    %s714 = scalar_lea.vmem [#allocation7], 2
    %v715 = vld [vmem:[%s714] sm:$0x1]
    %v717 = vperm.slane %v715, 0
    %719 = vmatpush.bf16.msra.mxu0 %v713
    %720 = vmatpush.bf16.msra.mxu0 %v712
    %721 = vmatpush.bf16.msra.mxu0 %v711
    %722 = vmatpush.bf16.msra.mxu0 %v710
    %723 = vmatpush.bf16.msra.mxu0 %v709
    %724 = vmatpush.bf16.msra.mxu0 %v708
    %725 = vmatpush.bf16.msra.mxu0 %v707
    %726 = vmatpush.bf16.msra.mxu0 %v706
    %727 = vmatmul.bf16.gmra.mxu0 %v335
    %v728 = vpop.f32.mrf.mxu0
    %v729 = vadd.f32 %v717, %v728
    %v730 = vpop.f32.mrf.mxu0
    %v731 = vadd.f32 %v717, %v730
    %732 = vmatmul.bf16.gmra.mxu0 %v336
    %v733 = vpop.f32.mrf.mxu0
    %v734 = vadd.f32 %v717, %v733
    %v735 = vpop.f32.mrf.mxu0
    %v736 = vadd.f32 %v717, %v735
    %737 = vmatmul.bf16.gmra.mxu0 %v337
    %v738 = vpop.f32.mrf.mxu0
    %v739 = vadd.f32 %v717, %v738
    %v740 = vpop.f32.mrf.mxu0
    %v741 = vadd.f32 %v717, %v740
    %742 = vmatmul.bf16.gmra.mxu0 %v338
    %v743 = vpop.f32.mrf.mxu0
    %v744 = vadd.f32 %v717, %v743
    %v745 = vpop.f32.mrf.mxu0
    %v746 = vadd.f32 %v717, %v745
    %747 = vmatmul.bf16.gmra.mxu0 %v339
    %v748 = vpop.f32.mrf.mxu0
    %v749 = vadd.f32 %v717, %v748
    %v750 = vpop.f32.mrf.mxu0
    %v751 = vadd.f32 %v717, %v750
    %752 = vmatmul.bf16.gmra.mxu0 %v340
    %v753 = vpop.f32.mrf.mxu0
    %v754 = vadd.f32 %v717, %v753
    %v755 = vpop.f32.mrf.mxu0
    %v756 = vadd.f32 %v717, %v755
    %757 = vmatmul.bf16.gmra.mxu0 %v341
    %v758 = vpop.f32.mrf.mxu0
    %v759 = vadd.f32 %v717, %v758
    %v760 = vpop.f32.mrf.mxu0
    %v761 = vadd.f32 %v717, %v760
    %762 = vmatmul.bf16.gmra.mxu0 %v342
    %v763 = vpop.f32.mrf.mxu0
    %v764 = vadd.f32 %v717, %v763
    %v765 = vpop.f32.mrf.mxu0
    %v766 = vadd.f32 %v717, %v765
    %767 = vdwg.mxu0
    %v768 = vpack.c.bf16 %v731, %v729
    %v769 = vpack.c.bf16 %v736, %v734
    %v770 = vpack.c.bf16 %v741, %v739
    %v771 = vpack.c.bf16 %v746, %v744
    %v772 = vpack.c.bf16 %v751, %v749
    %v773 = vpack.c.bf16 %v756, %v754
    %v774 = vpack.c.bf16 %v761, %v759
    %v775 = vpack.c.bf16 %v766, %v764
    %v776 = vld [vmem:[#allocation9] sm:$0xf]
    %v777 = vld [vmem:[#allocation9 + $0x4] sm:$0xf]
    %v780 = vunpack.c.l.b16 %v776
    %v781 = vunpack.c.l.b16 %v777
    %v782 = vpack.c.b16 %v781, %v780
    %784 = vmatpush.bf16.msra.mxu0 %v775
    %785 = vmatpush.bf16.msra.mxu0 %v774
    %786 = vmatpush.bf16.msra.mxu0 %v773
    %787 = vmatpush.bf16.msra.mxu0 %v772
    %788 = vmatpush.bf16.msra.mxu0 %v771
    %789 = vmatpush.bf16.msra.mxu0 %v770
    %790 = vmatpush.bf16.msra.mxu0 %v769
    %791 = vmatpush.bf16.msra.mxu0 %v768
    %792 = vmatmul.bf16.gmra.mxu0 %v782
    %v793 = vpop.f32.mrf.mxu0
    %v794 = vadd.f32 0.0, %v793
    %v795 = vpop.f32.mrf.mxu0
    %v796 = vadd.f32 0.0, %v795
    %797 = vdwg.mxu0
    %798 = vst [vmem:[%s5] sm:$0xff] %v794
    %799 = vst [vmem:[%s5 + $0x8] sm:$0xff] %v796
    // Predicated region
    $region42: #{_device_forward.1} parent=1 // pred_check
      _
    $region43: #{_device_forward.1} parent=1 // pred_check_branch
      %801 = sbr.rel (0) target = $region45
    $region44: #{_device_forward.1} parent=1 // pred_region
      _
    $region45: #{_device_forward.1} parent=1 // pred_fallthru
      _
    // Predicated region
    $region46: #{_device_forward.1} parent=1 // pred_check
      _
    $region47: #{_device_forward.1} parent=1 // pred_check_branch
      %803 = sbr.rel (0) target = $region49
    $region48: #{_device_forward.1} parent=1 // pred_region
      _
    $region49: #{_device_forward.1} parent=1 // pred_fallthru
      _
    %804 = vsyncpa [#allocation3], 1
    %805 = vsyncpa [#allocation5], 1
    %806 = vsyncpa [#allocation8], 1

</llo_original>
